<compile_context>
chip_gen: v7x
topology: tpu7x:2x2x1
jax: 0.10.0
libtpu: 0.0.40
codegen_flags: <defaults>
</compile_context>

<pallas_src>
import math

import jax
import jax.numpy as jnp
import numpy as np
from jax.experimental import pallas as pl
from jax.experimental.pallas import tpu as pltpu

# ---------------- configuration (small, consistent with the module) ----------------
SEQ_LEN = 8          # L
BATCH = 2            # N
EMBED_DIM = 32       # input_dim (E)
NUM_HEADS = 4        # num_heads
EXPANSION = 2        # expansion_factor
HIDDEN_DIM = EMBED_DIM * EXPANSION
HEAD_DIM = EMBED_DIM // NUM_HEADS
TOKENS = SEQ_LEN * BATCH            # flattened token count, row = l*N + n
LN_EPS = 1e-5
# dropout_rate = 0.0  -> dropout layers are identity in forward()

# the bitwise attention-group mask below requires powers of two (they are: 8, 2, 4)
assert all((v & (v - 1)) == 0 for v in (SEQ_LEN, BATCH, NUM_HEADS))


def _layer_norm(v, gamma, beta):
    mu = jnp.mean(v, axis=-1, keepdims=True)
    c = v - mu
    var = jnp.mean(c * c, axis=-1, keepdims=True)
    return c * jax.lax.rsqrt(var + LN_EPS) * gamma + beta


def _encoder_block_kernel(x_ref, wa_ref, w2_ref, vec_ref, o_ref):
    T, E, H, D, Hd, N = TOKENS, EMBED_DIM, NUM_HEADS, HEAD_DIM, HIDDEN_DIM, BATCH
    scale = 1.0 / math.sqrt(D)

    # ---- load everything once (all operands are tiny and VMEM-resident) ----
    x2 = x_ref[...]                       # (T, E)  tokens x features, row = l*N + n
    wa = wa_ref[...]                      # (E, 384): wqkv@0 | wo@128 | w1@256
    w2 = w2_ref[...]                      # (Hd, E)
    vec = vec_ref[...]                    # (8, 128): one bias/LN vector per row

    # tile-aligned static slices of the packed weights (lane offsets 0 / 128 / 256)
    wqkv = wa[:, 0:3 * E]
    wo = wa[:, 128:128 + E]
    w1 = wa[:, 256:256 + Hd]

    # packed vectors: one per sublane row, every lane slice starts at 0
    bqkv = vec[0:1, 0:3 * E]
    bo = vec[1:2, 0:E]
    g1 = vec[2:3, 0:E]
    be1 = vec[3:4, 0:E]
    b1 = vec[4:5, 0:Hd]
    b2 = vec[5:6, 0:E]
    g2 = vec[6:7, 0:E]
    be2 = vec[7:8, 0:E]

    # ---- in-projection: qkv = x @ Wqkv^T + b (weights pre-transposed offline) ----
    qkv = jnp.dot(x2, wqkv, preferred_element_type=jnp.float32) + bqkv       # (T, 3E)

    # ---- head-flatten to (H*T, D): row = h*T + t, with t = l*N + n --------------
    qf = jnp.concatenate(
        [qkv[:, h * D:(h + 1) * D] for h in range(H)], axis=0) * scale        # (HT, D)
    kf = jnp.concatenate(
        [qkv[:, E + h * D:E + (h + 1) * D] for h in range(H)], axis=0)
    vf = jnp.concatenate(
        [qkv[:, 2 * E + h * D:2 * E + (h + 1) * D] for h in range(H)], axis=0)

    # ---- single masked (HT, HT) score matmul + softmax + value matmul -----------
    HT = H * T
    ri = jax.lax.broadcasted_iota(jnp.int32, (HT, HT), 0)
    rj = jax.lax.broadcasted_iota(jnp.int32, (HT, HT), 1)
    # rows may attend to each other only within the same (head, batch) group;
    # with row = h*T + l*N + n the head bits and batch bits must match.
    group_bits = (H - 1) * T + (N - 1)
    valid = ((ri ^ rj) & group_bits) == 0

    s = jax.lax.dot_general(qf, kf, (((1,), (1,)), ((), ())),
                            preferred_element_type=jnp.float32)               # (HT, HT)
    s = jnp.where(valid, s, jnp.float32(-1e30))    # finite mask -> exp gives exact 0
    s = s - jnp.max(s, axis=-1, keepdims=True)
    p = jnp.exp(s)
    p = p * pl.reciprocal(jnp.sum(p, axis=-1, keepdims=True), approx=True)
    of = jnp.dot(p, vf, preferred_element_type=jnp.float32)                   # (HT, D)

    # merge heads back along the feature (lane) axis -> (T, E), token order kept
    attn = jnp.concatenate([of[h * T:(h + 1) * T, :] for h in range(H)], axis=-1)

    # ---- output projection + residual + LayerNorm1 ----
    attn_out = jnp.dot(attn, wo, preferred_element_type=jnp.float32) + bo
    res1 = attn_out + x2
    h1 = _layer_norm(res1, g1, be1)

    # ---- MLP (Linear -> ReLU -> Linear) + residual + LayerNorm2 ----
    ff = jnp.maximum(jnp.dot(h1, w1, preferred_element_type=jnp.float32) + b1, 0.0)
    ff = jnp.dot(ff, w2, preferred_element_type=jnp.float32) + b2
    res2 = ff + h1
    out = _layer_norm(res2, g2, be2)

    # direct (T, E) store; at this size a masked vst beats lane-padding + slicing
    o_ref[...] = out


def pack_params(params):
    """Pack the 13 parameter tensors into 3 lane-tile-aligned arrays (done once)."""
    E, Hd = EMBED_DIM, HIDDEN_DIM
    wa = jnp.zeros((E, 3 * 128), jnp.float32)
    wa = wa.at[:, 0:3 * E].set(params["wqkv"])
    wa = wa.at[:, 128:128 + E].set(params["wo"])
    wa = wa.at[:, 256:256 + Hd].set(params["w1"])

    vec = jnp.zeros((8, 128), jnp.float32)
    for row, (name, width) in enumerate(
            [("bqkv", 3 * E), ("bo", E), ("g1", E), ("be1", E),
             ("b1", Hd), ("b2", E), ("g2", E), ("be2", E)]):
        vec = vec.at[row, 0:width].set(params[name][0])
    return {"wa": wa, "w2": params["w2"], "vec": vec}


def transformer_encoder_block(x_lne, packed):
    """x_lne: (L, N, E) fp32 (PyTorch seq-first). Returns (L, N, E)."""
    L, N, E = x_lne.shape
    x2 = x_lne.reshape(L * N, E)          # free flatten (row = l*N + n), no transpose

    vmem = pl.BlockSpec(memory_space=pltpu.MemorySpace.VMEM)
    out = pl.pallas_call(
        _encoder_block_kernel,
        out_shape=jax.ShapeDtypeStruct((L * N, E), jnp.float32),
        in_specs=[vmem, vmem, vmem, vmem],
        out_specs=vmem,
    )(x2, packed["wa"], packed["w2"], packed["vec"])

    return out.reshape(L, N, E)           # free unflatten back to (L, N, E)


# ---------------- pure-JAX reference (same math) for sanity check ----------------
def reference_block(x_lne, params):
    x = jnp.transpose(x_lne, (1, 0, 2))
    N, L, E = x.shape
    H, D = NUM_HEADS, E // NUM_HEADS
    scale = 1.0 / math.sqrt(D)
    x2 = x.reshape(N * L, E)
    qkv = x2 @ params["wqkv"] + params["bqkv"]
    q, k, v = qkv[:, :E], qkv[:, E:2 * E], qkv[:, 2 * E:]
    q = q.reshape(N, L, H, D).transpose(0, 2, 1, 3) * scale
    k = k.reshape(N, L, H, D).transpose(0, 2, 1, 3)
    v = v.reshape(N, L, H, D).transpose(0, 2, 1, 3)
    s = jnp.einsum("nhld,nhmd->nhlm", q, k)
    p = jax.nn.softmax(s, axis=-1)
    a = jnp.einsum("nhlm,nhmd->nhld", p, v).transpose(0, 2, 1, 3).reshape(N * L, E)
    attn_out = a @ params["wo"] + params["bo"]
    res1 = attn_out + x2
    h1 = _layer_norm(res1, params["g1"], params["be1"])
    ff = jnp.maximum(h1 @ params["w1"] + params["b1"], 0.0) @ params["w2"] + params["b2"]
    out = _layer_norm(ff + h1, params["g2"], params["be2"])
    return jnp.transpose(out.reshape(N, L, E), (1, 0, 2))


def init_params(key):
    E, Hd = EMBED_DIM, HIDDEN_DIM
    ks = jax.random.split(key, 6)
    std = 0.05
    return {
        # qkv in-projection: stored pre-transposed so the kernel does x @ wqkv
        "wqkv": jax.random.normal(ks[0], (E, 3 * E), jnp.float32) * std,
        "bqkv": jax.random.normal(ks[1], (1, 3 * E), jnp.float32) * std,
        # attention out-projection
        "wo": jax.random.normal(ks[2], (E, E), jnp.float32) * std,
        "bo": jnp.zeros((1, E), jnp.float32),
        # LayerNorm 1
        "g1": jnp.ones((1, E), jnp.float32),
        "be1": jnp.zeros((1, E), jnp.float32),
        # MLP
        "w1": jax.random.normal(ks[3], (E, Hd), jnp.float32) * std,
        "b1": jax.random.normal(ks[4], (1, Hd), jnp.float32) * std,
        "w2": jax.random.normal(ks[5], (Hd, E), jnp.float32) * std,
        "b2": jnp.zeros((1, E), jnp.float32),
        # LayerNorm 2
        "g2": jnp.ones((1, E), jnp.float32),
        "be2": jnp.zeros((1, E), jnp.float32),
    }


if __name__ == "__main__":
    key = jax.random.PRNGKey(0)
    k_x, k_p = jax.random.split(key)
    x = jax.random.normal(k_x, (SEQ_LEN, BATCH, EMBED_DIM), jnp.float32)
    params = init_params(k_p)
    packed = pack_params(params)

    out = jax.block_until_ready(transformer_encoder_block(x, packed))
    ref = jax.block_until_ready(reference_block(x, params))

    assert out.shape == (SEQ_LEN, BATCH, EMBED_DIM)
    # tolerance loosened slightly (2e-3) because the softmax denominator uses the
    # EUP approximate reciprocal (pl.reciprocal(approx=True)).
    np.testing.assert_allclose(np.asarray(out), np.asarray(ref), atol=2e-3, rtol=2e-3)

    print("KERNEL_OK")
</pallas_src>

<mosaic_0001>
module attributes {stable_mosaic.version = 11 : i64} {
  func.func @_encoder_block_kernel(%arg0: memref<16x32xf32, #tpu.memory_space<vmem>>, %arg1: memref<32x384xf32, #tpu.memory_space<vmem>>, %arg2: memref<64x32xf32, #tpu.memory_space<vmem>>, %arg3: memref<8x128xf32, #tpu.memory_space<vmem>>, %arg4: memref<16x32xf32, #tpu.memory_space<vmem>>) attributes {dimension_semantics = [], scalar_prefetch = 0 : i64, scratch_operands = 0 : i64, tpu.core_type = #tpu.core_type<tc>} {
    %c0 = arith.constant 0 : index
    %c0_0 = arith.constant 0 : index
    %0 = vector.load %arg0[%c0, %c0_0] : memref<16x32xf32, #tpu.memory_space<vmem>>, vector<16x32xf32>
    %c0_1 = arith.constant 0 : index
    %c0_2 = arith.constant 0 : index
    %1 = vector.load %arg1[%c0_1, %c0_2] : memref<32x384xf32, #tpu.memory_space<vmem>>, vector<32x384xf32>
    %c0_3 = arith.constant 0 : index
    %c0_4 = arith.constant 0 : index
    %2 = vector.load %arg2[%c0_3, %c0_4] : memref<64x32xf32, #tpu.memory_space<vmem>>, vector<64x32xf32>
    %c0_5 = arith.constant 0 : index
    %c0_6 = arith.constant 0 : index
    %3 = vector.load %arg3[%c0_5, %c0_6] : memref<8x128xf32, #tpu.memory_space<vmem>>, vector<8x128xf32>
    %4 = vector.extract_strided_slice %1 {offsets = [0, 0], sizes = [32, 96], strides = [1, 1]} : vector<32x384xf32> to vector<32x96xf32>
    %5 = vector.extract_strided_slice %1 {offsets = [0, 128], sizes = [32, 32], strides = [1, 1]} : vector<32x384xf32> to vector<32x32xf32>
    %6 = vector.extract_strided_slice %1 {offsets = [0, 256], sizes = [32, 64], strides = [1, 1]} : vector<32x384xf32> to vector<32x64xf32>
    %7 = vector.extract_strided_slice %3 {offsets = [0, 0], sizes = [1, 96], strides = [1, 1]} : vector<8x128xf32> to vector<1x96xf32>
    %8 = vector.extract_strided_slice %3 {offsets = [1, 0], sizes = [1, 32], strides = [1, 1]} : vector<8x128xf32> to vector<1x32xf32>
    %9 = vector.extract_strided_slice %3 {offsets = [2, 0], sizes = [1, 32], strides = [1, 1]} : vector<8x128xf32> to vector<1x32xf32>
    %10 = vector.extract_strided_slice %3 {offsets = [3, 0], sizes = [1, 32], strides = [1, 1]} : vector<8x128xf32> to vector<1x32xf32>
    %11 = vector.extract_strided_slice %3 {offsets = [4, 0], sizes = [1, 64], strides = [1, 1]} : vector<8x128xf32> to vector<1x64xf32>
    %12 = vector.extract_strided_slice %3 {offsets = [5, 0], sizes = [1, 32], strides = [1, 1]} : vector<8x128xf32> to vector<1x32xf32>
    %13 = vector.extract_strided_slice %3 {offsets = [6, 0], sizes = [1, 32], strides = [1, 1]} : vector<8x128xf32> to vector<1x32xf32>
    %14 = vector.extract_strided_slice %3 {offsets = [7, 0], sizes = [1, 32], strides = [1, 1]} : vector<8x128xf32> to vector<1x32xf32>
    %cst = arith.constant dense<0.000000e+00> : vector<16x96xf32>
    %15 = tpu.matmul %0, %4, %cst {dimension_numbers = #tpu.dot_dimension_numbers<[1], [0], [0], [1], [0, 0, 1, 1], [], []>} : vector<16x32xf32>, vector<32x96xf32>, vector<16x96xf32> -> vector<16x96xf32>
    %16 = vector.broadcast %7 : vector<1x96xf32> to vector<16x96xf32>
    %17 = arith.addf %15, %16 : vector<16x96xf32>
    %18 = vector.extract_strided_slice %17 {offsets = [0, 0], sizes = [16, 8], strides = [1, 1]} : vector<16x96xf32> to vector<16x8xf32>
    %19 = vector.extract_strided_slice %17 {offsets = [0, 8], sizes = [16, 8], strides = [1, 1]} : vector<16x96xf32> to vector<16x8xf32>
    %20 = vector.extract_strided_slice %17 {offsets = [0, 16], sizes = [16, 8], strides = [1, 1]} : vector<16x96xf32> to vector<16x8xf32>
    %21 = vector.extract_strided_slice %17 {offsets = [0, 24], sizes = [16, 8], strides = [1, 1]} : vector<16x96xf32> to vector<16x8xf32>
    %22 = tpu.concatenate %18, %19, %20, %21 in 0 : vector<16x8xf32>, vector<16x8xf32>, vector<16x8xf32>, vector<16x8xf32> -> vector<64x8xf32>
    %cst_7 = arith.constant 0.353553385 : f32
    %23 = vector.broadcast %cst_7 : f32 to vector<64x8xf32>
    %24 = arith.mulf %22, %23 : vector<64x8xf32>
    %25 = vector.extract_strided_slice %17 {offsets = [0, 32], sizes = [16, 8], strides = [1, 1]} : vector<16x96xf32> to vector<16x8xf32>
    %26 = vector.extract_strided_slice %17 {offsets = [0, 40], sizes = [16, 8], strides = [1, 1]} : vector<16x96xf32> to vector<16x8xf32>
    %27 = vector.extract_strided_slice %17 {offsets = [0, 48], sizes = [16, 8], strides = [1, 1]} : vector<16x96xf32> to vector<16x8xf32>
    %28 = vector.extract_strided_slice %17 {offsets = [0, 56], sizes = [16, 8], strides = [1, 1]} : vector<16x96xf32> to vector<16x8xf32>
    %29 = tpu.concatenate %25, %26, %27, %28 in 0 : vector<16x8xf32>, vector<16x8xf32>, vector<16x8xf32>, vector<16x8xf32> -> vector<64x8xf32>
    %30 = vector.extract_strided_slice %17 {offsets = [0, 64], sizes = [16, 8], strides = [1, 1]} : vector<16x96xf32> to vector<16x8xf32>
    %31 = vector.extract_strided_slice %17 {offsets = [0, 72], sizes = [16, 8], strides = [1, 1]} : vector<16x96xf32> to vector<16x8xf32>
    %32 = vector.extract_strided_slice %17 {offsets = [0, 80], sizes = [16, 8], strides = [1, 1]} : vector<16x96xf32> to vector<16x8xf32>
    %33 = vector.extract_strided_slice %17 {offsets = [0, 88], sizes = [16, 8], strides = [1, 1]} : vector<16x96xf32> to vector<16x8xf32>
    %34 = tpu.concatenate %30, %31, %32, %33 in 0 : vector<16x8xf32>, vector<16x8xf32>, vector<16x8xf32>, vector<16x8xf32> -> vector<64x8xf32>
    %35 = tpu.iota {dimensions = array<i32: 0>} : vector<64x64xi32>
    %36 = tpu.iota {dimensions = array<i32: 1>} : vector<64x64xi32>
    %37 = arith.xori %35, %36 : vector<64x64xi32>
    %c49_i32 = arith.constant 49 : i32
    %38 = vector.broadcast %c49_i32 : i32 to vector<64x64xi32>
    %39 = arith.andi %37, %38 : vector<64x64xi32>
    %c0_i32 = arith.constant 0 : i32
    %40 = vector.broadcast %c0_i32 : i32 to vector<64x64xi32>
    %41 = arith.cmpi eq, %39, %40 : vector<64x64xi32>
    %cst_8 = arith.constant dense<0.000000e+00> : vector<64x64xf32>
    %42 = tpu.matmul %24, %29, %cst_8 {dimension_numbers = #tpu.dot_dimension_numbers<[1], [1], [0], [0], [0, 0, 1, 0], [], []>} : vector<64x8xf32>, vector<64x8xf32>, vector<64x64xf32> -> vector<64x64xf32>
    %cst_9 = arith.constant -1.000000e+30 : f32
    %43 = vector.broadcast %cst_9 : f32 to vector<64x64xf32>
    %44 = arith.select %41, %42, %43 : vector<64x64xi1>, vector<64x64xf32>
    %cst_10 = arith.constant dense<0xFF800000> : vector<64xf32>
    %45 = vector.multi_reduction <maximumf>, %44, %cst_10 [1] : vector<64x64xf32> to vector<64xf32>
    %46 = vector.shape_cast %45 : vector<64xf32> to vector<64x1xf32>
    %47 = vector.broadcast %46 : vector<64x1xf32> to vector<64x64xf32>
    %48 = arith.subf %44, %47 : vector<64x64xf32>
    %49 = math.exp %48 : vector<64x64xf32>
    %cst_11 = arith.constant dense<0.000000e+00> : vector<64xf32>
    %50 = vector.multi_reduction <add>, %49, %cst_11 [1] : vector<64x64xf32> to vector<64xf32>
    %51 = vector.shape_cast %50 : vector<64xf32> to vector<64x1xf32>
    %52 = tpu.reciprocal %51 {approx = true} : vector<64x1xf32> -> vector<64x1xf32>
    %53 = vector.broadcast %52 : vector<64x1xf32> to vector<64x64xf32>
    %54 = arith.mulf %49, %53 : vector<64x64xf32>
    %cst_12 = arith.constant dense<0.000000e+00> : vector<64x8xf32>
    %55 = tpu.matmul %54, %34, %cst_12 {dimension_numbers = #tpu.dot_dimension_numbers<[1], [0], [0], [1], [0, 0, 1, 1], [], []>} : vector<64x64xf32>, vector<64x8xf32>, vector<64x8xf32> -> vector<64x8xf32>
    %56 = vector.extract_strided_slice %55 {offsets = [0, 0], sizes = [16, 8], strides = [1, 1]} : vector<64x8xf32> to vector<16x8xf32>
    %57 = vector.extract_strided_slice %55 {offsets = [16, 0], sizes = [16, 8], strides = [1, 1]} : vector<64x8xf32> to vector<16x8xf32>
    %58 = vector.extract_strided_slice %55 {offsets = [32, 0], sizes = [16, 8], strides = [1, 1]} : vector<64x8xf32> to vector<16x8xf32>
    %59 = vector.extract_strided_slice %55 {offsets = [48, 0], sizes = [16, 8], strides = [1, 1]} : vector<64x8xf32> to vector<16x8xf32>
    %60 = tpu.concatenate %56, %57, %58, %59 in 1 : vector<16x8xf32>, vector<16x8xf32>, vector<16x8xf32>, vector<16x8xf32> -> vector<16x32xf32>
    %cst_13 = arith.constant dense<0.000000e+00> : vector<16x32xf32>
    %61 = tpu.matmul %60, %5, %cst_13 {dimension_numbers = #tpu.dot_dimension_numbers<[1], [0], [0], [1], [0, 0, 1, 1], [], []>} : vector<16x32xf32>, vector<32x32xf32>, vector<16x32xf32> -> vector<16x32xf32>
    %62 = vector.broadcast %8 : vector<1x32xf32> to vector<16x32xf32>
    %63 = arith.addf %61, %62 : vector<16x32xf32>
    %64 = arith.addf %63, %0 : vector<16x32xf32>
    %cst_14 = arith.constant dense<0.000000e+00> : vector<16xf32>
    %65 = vector.multi_reduction <add>, %64, %cst_14 [1] : vector<16x32xf32> to vector<16xf32>
    %66 = vector.shape_cast %65 : vector<16xf32> to vector<16x1xf32>
    %cst_15 = arith.constant 3.200000e+01 : f32
    %67 = vector.broadcast %cst_15 : f32 to vector<16x1xf32>
    %68 = arith.divf %66, %67 : vector<16x1xf32>
    %69 = vector.broadcast %68 : vector<16x1xf32> to vector<16x32xf32>
    %70 = arith.subf %64, %69 : vector<16x32xf32>
    %71 = arith.mulf %70, %70 : vector<16x32xf32>
    %cst_16 = arith.constant dense<0.000000e+00> : vector<16xf32>
    %72 = vector.multi_reduction <add>, %71, %cst_16 [1] : vector<16x32xf32> to vector<16xf32>
    %73 = vector.shape_cast %72 : vector<16xf32> to vector<16x1xf32>
    %cst_17 = arith.constant 3.200000e+01 : f32
    %74 = vector.broadcast %cst_17 : f32 to vector<16x1xf32>
    %75 = arith.divf %73, %74 : vector<16x1xf32>
    %cst_18 = arith.constant 9.99999974E-6 : f32
    %76 = vector.broadcast %cst_18 : f32 to vector<16x1xf32>
    %77 = arith.addf %75, %76 : vector<16x1xf32>
    %78 = math.rsqrt %77 : vector<16x1xf32>
    %79 = vector.broadcast %78 : vector<16x1xf32> to vector<16x32xf32>
    %80 = arith.mulf %70, %79 : vector<16x32xf32>
    %81 = vector.broadcast %9 : vector<1x32xf32> to vector<16x32xf32>
    %82 = arith.mulf %80, %81 : vector<16x32xf32>
    %83 = vector.broadcast %10 : vector<1x32xf32> to vector<16x32xf32>
    %84 = arith.addf %82, %83 : vector<16x32xf32>
    %cst_19 = arith.constant dense<0.000000e+00> : vector<16x64xf32>
    %85 = tpu.matmul %84, %6, %cst_19 {dimension_numbers = #tpu.dot_dimension_numbers<[1], [0], [0], [1], [0, 0, 1, 1], [], []>} : vector<16x32xf32>, vector<32x64xf32>, vector<16x64xf32> -> vector<16x64xf32>
    %86 = vector.broadcast %11 : vector<1x64xf32> to vector<16x64xf32>
    %87 = arith.addf %85, %86 : vector<16x64xf32>
    %cst_20 = arith.constant 0.000000e+00 : f32
    %88 = vector.broadcast %cst_20 : f32 to vector<16x64xf32>
    %89 = arith.maximumf %87, %88 : vector<16x64xf32>
    %cst_21 = arith.constant dense<0.000000e+00> : vector<16x32xf32>
    %90 = tpu.matmul %89, %2, %cst_21 {dimension_numbers = #tpu.dot_dimension_numbers<[1], [0], [0], [1], [0, 0, 1, 1], [], []>} : vector<16x64xf32>, vector<64x32xf32>, vector<16x32xf32> -> vector<16x32xf32>
    %91 = vector.broadcast %12 : vector<1x32xf32> to vector<16x32xf32>
    %92 = arith.addf %90, %91 : vector<16x32xf32>
    %93 = arith.addf %92, %84 : vector<16x32xf32>
    %cst_22 = arith.constant dense<0.000000e+00> : vector<16xf32>
    %94 = vector.multi_reduction <add>, %93, %cst_22 [1] : vector<16x32xf32> to vector<16xf32>
    %95 = vector.shape_cast %94 : vector<16xf32> to vector<16x1xf32>
    %cst_23 = arith.constant 3.200000e+01 : f32
    %96 = vector.broadcast %cst_23 : f32 to vector<16x1xf32>
    %97 = arith.divf %95, %96 : vector<16x1xf32>
    %98 = vector.broadcast %97 : vector<16x1xf32> to vector<16x32xf32>
    %99 = arith.subf %93, %98 : vector<16x32xf32>
    %100 = arith.mulf %99, %99 : vector<16x32xf32>
    %cst_24 = arith.constant dense<0.000000e+00> : vector<16xf32>
    %101 = vector.multi_reduction <add>, %100, %cst_24 [1] : vector<16x32xf32> to vector<16xf32>
    %102 = vector.shape_cast %101 : vector<16xf32> to vector<16x1xf32>
    %cst_25 = arith.constant 3.200000e+01 : f32
    %103 = vector.broadcast %cst_25 : f32 to vector<16x1xf32>
    %104 = arith.divf %102, %103 : vector<16x1xf32>
    %cst_26 = arith.constant 9.99999974E-6 : f32
    %105 = vector.broadcast %cst_26 : f32 to vector<16x1xf32>
    %106 = arith.addf %104, %105 : vector<16x1xf32>
    %107 = math.rsqrt %106 : vector<16x1xf32>
    %108 = vector.broadcast %107 : vector<16x1xf32> to vector<16x32xf32>
    %109 = arith.mulf %99, %108 : vector<16x32xf32>
    %110 = vector.broadcast %13 : vector<1x32xf32> to vector<16x32xf32>
    %111 = arith.mulf %109, %110 : vector<16x32xf32>
    %112 = vector.broadcast %14 : vector<1x32xf32> to vector<16x32xf32>
    %113 = arith.addf %111, %112 : vector<16x32xf32>
    %c0_27 = arith.constant 0 : index
    %c0_28 = arith.constant 0 : index
    %114 = vector.load %arg4[%c0_27, %c0_28] : memref<16x32xf32, #tpu.memory_space<vmem>>, vector<16x32xf32>
    tpu.vector_store %arg4[%c0_27, %c0_28], %113 {strides = array<i32>} : memref<16x32xf32, #tpu.memory_space<vmem>>, vector<16x32xf32>,
    return
  }
}

</mosaic_0001>

<llo_original>
// kernel: tpu_custom_call.1
$region0: #{tpu_custom_call.1}
  #allocation0 [shape = 'u32[]', space=smem, size = 0x4, offset = 0x4, fixed_abs, tag = 'smem constant byte address 0x4 - core index']
  #allocation1 [shape = 'u32[144,128]{1,0:T(1,128)}', space=vmem, size = 0x12000, scoped, tag = 'internal scratch']
  %s0 = inlined_call_operand.hbm [shape: f32[16,32], index: 0, kind: input, shape index: {}]
  %s1 = inlined_call_operand.vmem [shape: f32[32,384], index: 1, kind: input, shape index: {}]
  %s2 = inlined_call_operand.vmem [shape: f32[64,32], index: 2, kind: input, shape index: {}]
  %s3 = inlined_call_operand.vmem [shape: f32[8,128], index: 3, kind: input, shape index: {}]
  %s4 = inlined_call_operand.hbm [shape: f32[16,32], index: 4, kind: output, shape index: {}]
  %s5 = sld [smem:[#allocation0]]
  $region30: #{tpu_custom_call.1} parent=0
    _
  %s7 = ssub.s32 1, %s5
  %s8 = scalar_select 0, %s7, %s5
  $region1: #{tpu_custom_call.1} parent=0
    #allocation2 [shape = 'u8[8192]{0}', space=vmem, size = 0x2000, scoped, tag = 'input window, operand 0, single buffered']
    #allocation3 [shape = 's32[1]{0}', space=sflag, size = 0x4, scoped, tag = 'scoped memory for tpu_custom_call.1']
    #allocation4 [shape = 's32[1]{0}', space=sflag, size = 0x4, scoped, tag = 'scoped memory for tpu_custom_call.1']
    #allocation5 [shape = 'u8[8192]{0}', space=vmem, size = 0x2000, scoped, tag = 'output window, operand 0, single buffered']
    %9 = vsyncpa [#allocation3], 0
    %10 = vsyncpa [#allocation4], 0
    // Predicated region
    $region2: #{tpu_custom_call.1} parent=1 // pred_check
      _
    $region3: #{tpu_custom_call.1} parent=1 // pred_check_branch
      %12 = sbr.rel (0) target = $region5
    $region4: #{tpu_custom_call.1} parent=1 // pred_region
      %s14 = ssub.s32 256, 256
      %15 = vsyncadd [#allocation3], %s14
      %s16 = sshll.u32 [#allocation2], 4
      %s17 = int_to_ptr.vmem [resolvable:$true] %s16
      %22 = dma.hbm_to_vmem [thread:$0]  %s0, 256, %s17, [#allocation3], 128, 128, 8
    $region5: #{tpu_custom_call.1} parent=1 // pred_fallthru
      _
    // Predicated region
    $region6: #{tpu_custom_call.1} parent=1 // pred_check
      _
    $region7: #{tpu_custom_call.1} parent=1 // pred_check_branch
      %24 = sbr.rel (0) target = $region9
    $region8: #{tpu_custom_call.1} parent=1 // pred_region
      _
    $region9: #{tpu_custom_call.1} parent=1 // pred_fallthru
      _
    // Predicated region
    $region10: #{tpu_custom_call.1} parent=1 // pred_check
      _
    $region11: #{tpu_custom_call.1} parent=1 // pred_check_branch
      %26 = sbr.rel (0) target = $region13
    $region12: #{tpu_custom_call.1} parent=1 // pred_region
      _
    $region13: #{tpu_custom_call.1} parent=1 // pred_fallthru
      _
    // Predicated region
    $region14: #{tpu_custom_call.1} parent=1 // pred_check
      _
    $region15: #{tpu_custom_call.1} parent=1 // pred_check_branch
      %28 = sbr.rel (0) target = $region17
    $region16: #{tpu_custom_call.1} parent=1 // pred_region
      _
    $region17: #{tpu_custom_call.1} parent=1 // pred_fallthru
      _
    // Predicated region
    $region18: #{tpu_custom_call.1} parent=1 // pred_check
      _
    $region19: #{tpu_custom_call.1} parent=1 // pred_check_branch
      %30 = sbr.rel (0) target = $region21
    $region20: #{tpu_custom_call.1} parent=1 // pred_region
      %31 = dma.done [#allocation3], 256
    $region21: #{tpu_custom_call.1} parent=1 // pred_fallthru
      _
    %v32 = vld [vmem:[#allocation2] sm:$0xff]
    %v33 = vld [vmem:[#allocation2 + $0x8] sm:$0xff]
    %v34 = vld [vmem:[%s1] sm:$0xff]
    %v35 = vld [vmem:[%s1 + $0x8] sm:$0xff]
    %v36 = vld [vmem:[%s1 + $0x10] sm:$0xff]
    %v37 = vld [vmem:[%s1 + $0x18] sm:$0xff]
    %v38 = vld [vmem:[%s1 + $0x20] sm:$0xff]
    %v39 = vld [vmem:[%s1 + $0x28] sm:$0xff]
    %v40 = vld [vmem:[%s1 + $0x30] sm:$0xff]
    %v41 = vld [vmem:[%s1 + $0x38] sm:$0xff]
    %v42 = vld [vmem:[%s1 + $0x40] sm:$0xff]
    %v43 = vld [vmem:[%s1 + $0x48] sm:$0xff]
    %v44 = vld [vmem:[%s1 + $0x50] sm:$0xff]
    %v45 = vld [vmem:[%s1 + $0x58] sm:$0xff]
    %v46 = vld [vmem:[%s2] sm:$0xff]
    %v47 = vld [vmem:[%s2 + $0x8] sm:$0xff]
    %v48 = vld [vmem:[%s2 + $0x10] sm:$0xff]
    %v49 = vld [vmem:[%s2 + $0x18] sm:$0xff]
    %v50 = vld [vmem:[%s2 + $0x20] sm:$0xff]
    %v51 = vld [vmem:[%s2 + $0x28] sm:$0xff]
    %v52 = vld [vmem:[%s2 + $0x30] sm:$0xff]
    %v53 = vld [vmem:[%s2 + $0x38] sm:$0xff]
    %v54 = vld [vmem:[%s3] sm:$0xff]
    %v55 = vlaneseq
    %v56 = vshrl.u32 %v55, 7
    %v57 = vsub.s32 0, %v56
    %v58 = vrot.slane %v54, %v57
    %vm59 = vcmask 261120
    %v61 = vsel %vm59, %v32, 0
    %v64 = vsel %vm59, %v33, 0
    %66 = vmatprep.subr.mxu0 0.0
    %67 = vmatpush1.msra.mxu0 %v34
    %68 = vmatprep.subr.mxu0 0.0
    %69 = vmatpush1.msra.mxu0 %v37
    %70 = vmatprep.subr.mxu0 0.0
    %71 = vmatpush1.msra.mxu0 %v40
    %72 = vmatprep.subr.mxu0 0.0
    %73 = vmatpush1.msra.mxu0 %v43
    %74 = vmatprep.subr.mxu0 0.0
    %75 = vmatpush1.msra.mxu0 0.0
    %76 = vmatprep.subr.mxu0 0.0
    %77 = vmatpush1.msra.mxu0 0.0
    %78 = vmatprep.subr.mxu0 0.0
    %79 = vmatpush1.msra.mxu0 0.0
    %80 = vmatprep.subr.mxu0 0.0
    %81 = vmatpush1.msra.mxu0 0.0
    %82 = vmatprep.subr.mxu0 0.0
    %83 = vmatpush1.msra.mxu0 0.0
    %84 = vmatprep.subr.mxu0 0.0
    %85 = vmatpush1.msra.mxu0 0.0
    %86 = vmatprep.subr.mxu0 0.0
    %87 = vmatpush1.msra.mxu0 0.0
    %88 = vmatprep.subr.mxu0 0.0
    %89 = vmatpush1.msra.mxu0 0.0
    %90 = vmatprep.subr.mxu0 0.0
    %91 = vmatpush1.msra.mxu0 0.0
    %92 = vmatprep.subr.mxu0 0.0
    %93 = vmatpush1.msra.mxu0 0.0
    %94 = vmatprep.subr.mxu0 0.0
    %95 = vmatpush1.msra.mxu0 0.0
    %96 = vmatprep.subr.mxu0 0.0
    %97 = vmatpush1.msra.mxu0 0.0
    %98 = vmatprep.subr.mxu0 0.0
    %99 = vmatpush1.msra.mxu0 0.0
    %100 = vmatprep.subr.mxu0 0.0
    %101 = vmatpush1.msra.mxu0 0.0
    %102 = vmatprep.subr.mxu0 0.0
    %103 = vmatpush1.msra.mxu0 0.0
    %104 = vmatprep.subr.mxu0 0.0
    %105 = vmatpush1.msra.mxu0 0.0
    %106 = vmatprep.subr.mxu0 0.0
    %107 = vmatpush1.msra.mxu0 0.0
    %108 = vmatprep.subr.mxu0 0.0
    %109 = vmatpush1.msra.mxu0 0.0
    %110 = vmatprep.subr.mxu0 0.0
    %111 = vmatpush1.msra.mxu0 0.0
    %112 = vmatprep.subr.mxu0 0.0
    %113 = vmatpush1.msra.mxu0 0.0
    %114 = vmatprep.subr.mxu0 0.0
    %115 = vmatpush1.msra.mxu0 0.0
    %116 = vmatprep.subr.mxu0 0.0
    %117 = vmatpush1.msra.mxu0 0.0
    %118 = vmatprep.subr.mxu0 0.0
    %119 = vmatpush1.msra.mxu0 0.0
    %120 = vmatprep.subr.mxu0 0.0
    %121 = vmatpush1.msra.mxu0 0.0
    %122 = vmatprep.subr.mxu0 0.0
    %123 = vmatpush1.msra.mxu0 0.0
    %124 = vmatprep.subr.mxu0 0.0
    %125 = vmatpush1.msra.mxu0 0.0
    %126 = vmatprep.subr.mxu0 0.0
    %127 = vmatpush1.msra.mxu0 0.0
    %128 = vmatprep.subr.mxu0 0.0
    %129 = vmatpush1.msra.mxu0 0.0
    %130 = vmatprep.mubr.f32.mxu0 0.0
    %131 = vmatmul.mubr.f32.gmra.mrb[0].mxu0 %v61
    %v132 = vpop.f32.mrb[0].mxu0
    %v133 = vadd.f32 %v58, %v132
    %v134 = vpop.f32.mrb[0].mxu0
    %135 = vmatprep.mubr.f32.mxu0 0.0
    %136 = vmatmul.mubr.f32.gmra.mrb[0].mxu0 %v64
    %v137 = vpop.f32.mrb[0].mxu0
    %v138 = vadd.f32 %v58, %v137
    %v139 = vpop.f32.mrb[0].mxu0
    %140 = vdwg.mxu0
    %143 = vrot.lane.b32.xlu0 %v133, 120
    %v144 = vpop.permute.xlu0 %143
    %145 = vrot.lane.b32.xlu0 %v138, 120
    %v146 = vpop.permute.xlu0 %145
    %149 = vrot.lane.b32.xlu0 %v133, 112
    %v150 = vpop.permute.xlu0 %149
    %151 = vrot.lane.b32.xlu0 %v138, 112
    %v152 = vpop.permute.xlu0 %151
    %155 = vrot.lane.b32.xlu0 %v133, 104
    %v156 = vpop.permute.xlu0 %155
    %157 = vrot.lane.b32.xlu0 %v138, 104
    %v158 = vpop.permute.xlu0 %157
    %v161 = vmul.f32 %v133, 0.35355338
    %v162 = vmul.f32 %v138, 0.35355338
    %v163 = vmul.f32 %v144, 0.35355338
    %v164 = vmul.f32 %v146, 0.35355338
    %v165 = vmul.f32 %v150, 0.35355338
    %v166 = vmul.f32 %v152, 0.35355338
    %v167 = vmul.f32 %v156, 0.35355338
    %v168 = vmul.f32 %v158, 0.35355338
    %v169 = vlaneseq
    %v170 = vshrl.u32 %v169, 7
    %v171 = vadd.s32 %v170, 8
    %v172 = vadd.s32 %v170, 16
    %v173 = vadd.s32 %v170, 24
    %v174 = vadd.s32 %v170, 32
    %v175 = vadd.s32 %v170, 40
    %v176 = vadd.s32 %v170, 48
    %v177 = vadd.s32 %v170, 56
    %v178 = vlaneseq
    %v179 = vand.u32 %v178, 127
    %v180 = vxor.u32 %v170, %v179
    %v181 = vxor.u32 %v171, %v179
    %v182 = vxor.u32 %v172, %v179
    %v183 = vxor.u32 %v173, %v179
    %v184 = vxor.u32 %v174, %v179
    %v185 = vxor.u32 %v175, %v179
    %v186 = vxor.u32 %v176, %v179
    %v187 = vxor.u32 %v177, %v179
    %v188 = vand.u32 %v180, 49
    %v189 = vand.u32 %v181, 49
    %v190 = vand.u32 %v182, 49
    %v191 = vand.u32 %v183, 49
    %v192 = vand.u32 %v184, 49
    %v193 = vand.u32 %v185, 49
    %v194 = vand.u32 %v186, 49
    %v195 = vand.u32 %v187, 49
    %vm196 = vcmp.eq.s32.totalorder %v188, 0
    %vm197 = vcmp.eq.s32.totalorder %v189, 0
    %vm198 = vcmp.eq.s32.totalorder %v190, 0
    %vm199 = vcmp.eq.s32.totalorder %v191, 0
    %vm200 = vcmp.eq.s32.totalorder %v192, 0
    %vm201 = vcmp.eq.s32.totalorder %v193, 0
    %vm202 = vcmp.eq.s32.totalorder %v194, 0
    %vm203 = vcmp.eq.s32.totalorder %v195, 0
    %204 = vrot.lane.b32.xlu0 %v133, 96
    %v205 = vpop.permute.xlu0 %204
    %206 = vrot.lane.b32.xlu0 %v138, 96
    %v207 = vpop.permute.xlu0 %206
    %208 = vrot.lane.b32.xlu0 %v144, 96
    %v209 = vpop.permute.xlu0 %208
    %210 = vrot.lane.b32.xlu0 %v146, 96
    %v211 = vpop.permute.xlu0 %210
    %212 = vrot.lane.b32.xlu0 %v150, 96
    %v213 = vpop.permute.xlu0 %212
    %214 = vrot.lane.b32.xlu0 %v152, 96
    %v215 = vpop.permute.xlu0 %214
    %216 = vrot.lane.b32.xlu0 %v156, 96
    %v217 = vpop.permute.xlu0 %216
    %218 = vrot.lane.b32.xlu0 %v158, 96
    %v219 = vpop.permute.xlu0 %218
    %vm220 = vcmask 64512
    %v222 = vsel %vm220, %v161, 0
    %v225 = vsel %vm220, %v162, 0
    %v228 = vsel %vm220, %v163, 0
    %v231 = vsel %vm220, %v164, 0
    %v234 = vsel %vm220, %v165, 0
    %v237 = vsel %vm220, %v166, 0
    %v240 = vsel %vm220, %v167, 0
    %v243 = vsel %vm220, %v168, 0
    %v245 = vsel %vm220, %v205, 0
    %v247 = vsel %vm220, %v207, 0
    %v249 = vsel %vm220, %v209, 0
    %v251 = vsel %vm220, %v211, 0
    %v253 = vsel %vm220, %v213, 0
    %v255 = vsel %vm220, %v215, 0
    %v257 = vsel %vm220, %v217, 0
    %v259 = vsel %vm220, %v219, 0
    %261 = vmatprep.subr.mxu0 0.0
    %262 = vmatpush1.xpose.msra.mxu0 %v245
    %263 = vmatprep.subr.mxu0 0.0
    %264 = vmatpush1.xpose.msra.mxu0 %v247
    %265 = vmatprep.subr.mxu0 0.0
    %266 = vmatpush1.xpose.msra.mxu0 %v249
    %267 = vmatprep.subr.mxu0 0.0
    %268 = vmatpush1.xpose.msra.mxu0 %v251
    %269 = vmatprep.subr.mxu0 0.0
    %270 = vmatpush1.xpose.msra.mxu0 %v253
    %271 = vmatprep.subr.mxu0 0.0
    %272 = vmatpush1.xpose.msra.mxu0 %v255
    %273 = vmatprep.subr.mxu0 0.0
    %274 = vmatpush1.xpose.msra.mxu0 %v257
    %275 = vmatprep.subr.mxu0 0.0
    %276 = vmatpush1.xpose.msra.mxu0 %v259
    %277 = vmatprep.subr.mxu0 0.0
    %278 = vmatpush1.xpose.msra.mxu0 0.0
    %279 = vmatprep.subr.mxu0 0.0
    %280 = vmatpush1.xpose.msra.mxu0 0.0
    %281 = vmatprep.subr.mxu0 0.0
    %282 = vmatpush1.xpose.msra.mxu0 0.0
    %283 = vmatprep.subr.mxu0 0.0
    %284 = vmatpush1.xpose.msra.mxu0 0.0
    %285 = vmatprep.subr.mxu0 0.0
    %286 = vmatpush1.xpose.msra.mxu0 0.0
    %287 = vmatprep.subr.mxu0 0.0
    %288 = vmatpush1.xpose.msra.mxu0 0.0
    %289 = vmatprep.subr.mxu0 0.0
    %290 = vmatpush1.xpose.msra.mxu0 0.0
    %291 = vmatprep.subr.mxu0 0.0
    %292 = vmatpush1.xpose.msra.mxu0 0.0
    %293 = vmatprep.subr.mxu0 0.0
    %294 = vmatpush1.xpose.msra.mxu0 0.0
    %295 = vmatprep.subr.mxu0 0.0
    %296 = vmatpush1.xpose.msra.mxu0 0.0
    %297 = vmatprep.subr.mxu0 0.0
    %298 = vmatpush1.xpose.msra.mxu0 0.0
    %299 = vmatprep.subr.mxu0 0.0
    %300 = vmatpush1.xpose.msra.mxu0 0.0
    %301 = vmatprep.subr.mxu0 0.0
    %302 = vmatpush1.xpose.msra.mxu0 0.0
    %303 = vmatprep.subr.mxu0 0.0
    %304 = vmatpush1.xpose.msra.mxu0 0.0
    %305 = vmatprep.subr.mxu0 0.0
    %306 = vmatpush1.xpose.msra.mxu0 0.0
    %307 = vmatprep.subr.mxu0 0.0
    %308 = vmatpush1.xpose.msra.mxu0 0.0
    %309 = vmatprep.subr.mxu0 0.0
    %310 = vmatpush1.xpose.msra.mxu0 0.0
    %311 = vmatprep.subr.mxu0 0.0
    %312 = vmatpush1.xpose.msra.mxu0 0.0
    %313 = vmatprep.subr.mxu0 0.0
    %314 = vmatpush1.xpose.msra.mxu0 0.0
    %315 = vmatprep.subr.mxu0 0.0
    %316 = vmatpush1.xpose.msra.mxu0 0.0
    %317 = vmatprep.subr.mxu0 0.0
    %318 = vmatpush1.xpose.msra.mxu0 0.0
    %319 = vmatprep.subr.mxu0 0.0
    %320 = vmatpush1.xpose.msra.mxu0 0.0
    %321 = vmatprep.subr.mxu0 0.0
    %322 = vmatpush1.xpose.msra.mxu0 0.0
    %323 = vmatprep.subr.mxu0 0.0
    %324 = vmatpush1.xpose.msra.mxu0 0.0
    %325 = vmatprep.mubr.f32.mxu0 0.0
    %326 = vmatmul.mubr.f32.gmra.mrb[0].mxu0 %v222
    %v327 = vpop.f32.mrb[0].mxu0
    %v328 = vadd.f32 0.0, %v327
    %v329 = vpop.f32.mrb[0].mxu0
    %330 = vmatprep.mubr.f32.mxu0 0.0
    %331 = vmatmul.mubr.f32.gmra.mrb[0].mxu0 %v225
    %v332 = vpop.f32.mrb[0].mxu0
    %v333 = vadd.f32 0.0, %v332
    %v334 = vpop.f32.mrb[0].mxu0
    %335 = vmatprep.mubr.f32.mxu0 0.0
    %336 = vmatmul.mubr.f32.gmra.mrb[0].mxu0 %v228
    %v337 = vpop.f32.mrb[0].mxu0
    %v338 = vadd.f32 0.0, %v337
    %v339 = vpop.f32.mrb[0].mxu0
    %340 = vmatprep.mubr.f32.mxu0 0.0
    %341 = vmatmul.mubr.f32.gmra.mrb[0].mxu0 %v231
    %v342 = vpop.f32.mrb[0].mxu0
    %v343 = vadd.f32 0.0, %v342
    %v344 = vpop.f32.mrb[0].mxu0
    %345 = vmatprep.mubr.f32.mxu0 0.0
    %346 = vmatmul.mubr.f32.gmra.mrb[0].mxu0 %v234
    %v347 = vpop.f32.mrb[0].mxu0
    %v348 = vadd.f32 0.0, %v347
    %v349 = vpop.f32.mrb[0].mxu0
    %350 = vmatprep.mubr.f32.mxu0 0.0
    %351 = vmatmul.mubr.f32.gmra.mrb[0].mxu0 %v237
    %v352 = vpop.f32.mrb[0].mxu0
    %v353 = vadd.f32 0.0, %v352
    %v354 = vpop.f32.mrb[0].mxu0
    %355 = vmatprep.mubr.f32.mxu0 0.0
    %356 = vmatmul.mubr.f32.gmra.mrb[0].mxu0 %v240
    %v357 = vpop.f32.mrb[0].mxu0
    %v358 = vadd.f32 0.0, %v357
    %v359 = vpop.f32.mrb[0].mxu0
    %360 = vmatprep.mubr.f32.mxu0 0.0
    %361 = vmatmul.mubr.f32.gmra.mrb[0].mxu0 %v243
    %v362 = vpop.f32.mrb[0].mxu0
    %v363 = vadd.f32 0.0, %v362
    %v364 = vpop.f32.mrb[0].mxu0
    %365 = vdwg.mxu0
    %v366 = vsel %vm196, %v328, -1e+30
    %v367 = vsel %vm197, %v333, -1e+30
    %v368 = vsel %vm198, %v338, -1e+30
    %v369 = vsel %vm199, %v343, -1e+30
    %v370 = vsel %vm200, %v348, -1e+30
    %v371 = vsel %vm201, %v353, -1e+30
    %v372 = vsel %vm202, %v358, -1e+30
    %v373 = vsel %vm203, %v363, -1e+30
    %vm374 = vcmask 523264
    %v375 = vsel %vm374, %v366, -inf
    %376 = vmax.xlane.f32.xlu0 %v375
    %v377 = vpop.xlane.xlu0 %376
    %v378 = vsel %vm374, %v367, -inf
    %379 = vmax.xlane.f32.xlu0 %v378
    %v380 = vpop.xlane.xlu0 %379
    %v381 = vsel %vm374, %v368, -inf
    %382 = vmax.xlane.f32.xlu0 %v381
    %v383 = vpop.xlane.xlu0 %382
    %v384 = vsel %vm374, %v369, -inf
    %385 = vmax.xlane.f32.xlu0 %v384
    %v386 = vpop.xlane.xlu0 %385
    %v387 = vsel %vm374, %v370, -inf
    %388 = vmax.xlane.f32.xlu0 %v387
    %v389 = vpop.xlane.xlu0 %388
    %v390 = vsel %vm374, %v371, -inf
    %391 = vmax.xlane.f32.xlu0 %v390
    %v392 = vpop.xlane.xlu0 %391
    %v393 = vsel %vm374, %v372, -inf
    %394 = vmax.xlane.f32.xlu0 %v393
    %v395 = vpop.xlane.xlu0 %394
    %v396 = vsel %vm374, %v373, -inf
    %397 = vmax.xlane.f32.xlu0 %v396
    %v398 = vpop.xlane.xlu0 %397
    %v399 = vsub.f32 %v366, %v377
    %v400 = vsub.f32 %v367, %v380
    %v401 = vsub.f32 %v368, %v383
    %v402 = vsub.f32 %v369, %v386
    %v403 = vsub.f32 %v370, %v389
    %v404 = vsub.f32 %v371, %v392
    %v405 = vsub.f32 %v372, %v395
    %v406 = vsub.f32 %v373, %v398
    %v407 = vmul.f32 %v399, 1.442695
    %v408 = vpow.pop %v407
    %v409 = vmul.f32 %v400, 1.442695
    %v410 = vpow.pop %v409
    %v411 = vmul.f32 %v401, 1.442695
    %v412 = vpow.pop %v411
    %v413 = vmul.f32 %v402, 1.442695
    %v414 = vpow.pop %v413
    %v415 = vmul.f32 %v403, 1.442695
    %v416 = vpow.pop %v415
    %v417 = vmul.f32 %v404, 1.442695
    %v418 = vpow.pop %v417
    %v419 = vmul.f32 %v405, 1.442695
    %v420 = vpow.pop %v419
    %v421 = vmul.f32 %v406, 1.442695
    %v422 = vpow.pop %v421
    %v423 = vsel %vm374, %v408, 0.0
    %424 = vadd.xlane.f32.xlu0 %v423
    %v425 = vpop.xlane.xlu0 %424
    %v426 = vsel %vm374, %v410, 0.0
    %427 = vadd.xlane.f32.xlu0 %v426
    %v428 = vpop.xlane.xlu0 %427
    %v429 = vsel %vm374, %v412, 0.0
    %430 = vadd.xlane.f32.xlu0 %v429
    %v431 = vpop.xlane.xlu0 %430
    %v432 = vsel %vm374, %v414, 0.0
    %433 = vadd.xlane.f32.xlu0 %v432
    %v434 = vpop.xlane.xlu0 %433
    %v435 = vsel %vm374, %v416, 0.0
    %436 = vadd.xlane.f32.xlu0 %v435
    %v437 = vpop.xlane.xlu0 %436
    %v438 = vsel %vm374, %v418, 0.0
    %439 = vadd.xlane.f32.xlu0 %v438
    %v440 = vpop.xlane.xlu0 %439
    %v441 = vsel %vm374, %v420, 0.0
    %442 = vadd.xlane.f32.xlu0 %v441
    %v443 = vpop.xlane.xlu0 %442
    %v444 = vsel %vm374, %v422, 0.0
    %445 = vadd.xlane.f32.xlu0 %v444
    %v446 = vpop.xlane.xlu0 %445
    %v447 = vrcp.pop %v425
    %v448 = vrcp.pop %v428
    %v449 = vrcp.pop %v431
    %v450 = vrcp.pop %v434
    %v451 = vrcp.pop %v437
    %v452 = vrcp.pop %v440
    %v453 = vrcp.pop %v443
    %v454 = vrcp.pop %v446
    %v455 = vmul.f32 %v408, %v447
    %v456 = vmul.f32 %v410, %v448
    %v457 = vmul.f32 %v412, %v449
    %v458 = vmul.f32 %v414, %v450
    %v459 = vmul.f32 %v416, %v451
    %v460 = vmul.f32 %v418, %v452
    %v461 = vmul.f32 %v420, %v453
    %v462 = vmul.f32 %v422, %v454
    %463 = vrot.lane.b32.xlu0 %v133, 64
    %v464 = vpop.permute.xlu0 %463
    %465 = vrot.lane.b32.xlu0 %v138, 64
    %v466 = vpop.permute.xlu0 %465
    %467 = vrot.lane.b32.xlu0 %v144, 64
    %v468 = vpop.permute.xlu0 %467
    %469 = vrot.lane.b32.xlu0 %v146, 64
    %v470 = vpop.permute.xlu0 %469
    %471 = vrot.lane.b32.xlu0 %v150, 64
    %v472 = vpop.permute.xlu0 %471
    %473 = vrot.lane.b32.xlu0 %v152, 64
    %v474 = vpop.permute.xlu0 %473
    %475 = vrot.lane.b32.xlu0 %v156, 64
    %v476 = vpop.permute.xlu0 %475
    %477 = vrot.lane.b32.xlu0 %v158, 64
    %v478 = vpop.permute.xlu0 %477
    %v488 = vsel %vm374, %v455, 0
    %v491 = vsel %vm374, %v456, 0
    %v494 = vsel %vm374, %v457, 0
    %v497 = vsel %vm374, %v458, 0
    %v500 = vsel %vm374, %v459, 0
    %v503 = vsel %vm374, %v460, 0
    %v506 = vsel %vm374, %v461, 0
    %v509 = vsel %vm374, %v462, 0
    %511 = vmatprep.subr.mxu0 0.0
    %512 = vmatpush1.msra.mxu0 %v464
    %513 = vmatprep.subr.mxu0 0.0
    %514 = vmatpush1.msra.mxu0 %v466
    %515 = vmatprep.subr.mxu0 0.0
    %516 = vmatpush1.msra.mxu0 %v468
    %517 = vmatprep.subr.mxu0 0.0
    %518 = vmatpush1.msra.mxu0 %v470
    %519 = vmatprep.subr.mxu0 0.0
    %520 = vmatpush1.msra.mxu0 %v472
    %521 = vmatprep.subr.mxu0 0.0
    %522 = vmatpush1.msra.mxu0 %v474
    %523 = vmatprep.subr.mxu0 0.0
    %524 = vmatpush1.msra.mxu0 %v476
    %525 = vmatprep.subr.mxu0 0.0
    %526 = vmatpush1.msra.mxu0 %v478
    %527 = vmatprep.subr.mxu0 0.0
    %528 = vmatpush1.msra.mxu0 0.0
    %529 = vmatprep.subr.mxu0 0.0
    %530 = vmatpush1.msra.mxu0 0.0
    %531 = vmatprep.subr.mxu0 0.0
    %532 = vmatpush1.msra.mxu0 0.0
    %533 = vmatprep.subr.mxu0 0.0
    %534 = vmatpush1.msra.mxu0 0.0
    %535 = vmatprep.subr.mxu0 0.0
    %536 = vmatpush1.msra.mxu0 0.0
    %537 = vmatprep.subr.mxu0 0.0
    %538 = vmatpush1.msra.mxu0 0.0
    %539 = vmatprep.subr.mxu0 0.0
    %540 = vmatpush1.msra.mxu0 0.0
    %541 = vmatprep.subr.mxu0 0.0
    %542 = vmatpush1.msra.mxu0 0.0
    %543 = vmatprep.subr.mxu0 0.0
    %544 = vmatpush1.msra.mxu0 0.0
    %545 = vmatprep.subr.mxu0 0.0
    %546 = vmatpush1.msra.mxu0 0.0
    %547 = vmatprep.subr.mxu0 0.0
    %548 = vmatpush1.msra.mxu0 0.0
    %549 = vmatprep.subr.mxu0 0.0
    %550 = vmatpush1.msra.mxu0 0.0
    %551 = vmatprep.subr.mxu0 0.0
    %552 = vmatpush1.msra.mxu0 0.0
    %553 = vmatprep.subr.mxu0 0.0
    %554 = vmatpush1.msra.mxu0 0.0
    %555 = vmatprep.subr.mxu0 0.0
    %556 = vmatpush1.msra.mxu0 0.0
    %557 = vmatprep.subr.mxu0 0.0
    %558 = vmatpush1.msra.mxu0 0.0
    %559 = vmatprep.subr.mxu0 0.0
    %560 = vmatpush1.msra.mxu0 0.0
    %561 = vmatprep.subr.mxu0 0.0
    %562 = vmatpush1.msra.mxu0 0.0
    %563 = vmatprep.subr.mxu0 0.0
    %564 = vmatpush1.msra.mxu0 0.0
    %565 = vmatprep.subr.mxu0 0.0
    %566 = vmatpush1.msra.mxu0 0.0
    %567 = vmatprep.subr.mxu0 0.0
    %568 = vmatpush1.msra.mxu0 0.0
    %569 = vmatprep.subr.mxu0 0.0
    %570 = vmatpush1.msra.mxu0 0.0
    %571 = vmatprep.subr.mxu0 0.0
    %572 = vmatpush1.msra.mxu0 0.0
    %573 = vmatprep.subr.mxu0 0.0
    %574 = vmatpush1.msra.mxu0 0.0
    %575 = vmatprep.mubr.f32.mxu0 0.0
    %576 = vmatmul.mubr.f32.gmra.mrb[0].mxu0 %v488
    %v577 = vpop.f32.mrb[0].mxu0
    %v578 = vadd.f32 0.0, %v577
    %v579 = vpop.f32.mrb[0].mxu0
    %580 = vmatprep.mubr.f32.mxu0 0.0
    %581 = vmatmul.mubr.f32.gmra.mrb[0].mxu0 %v491
    %v582 = vpop.f32.mrb[0].mxu0
    %v583 = vadd.f32 0.0, %v582
    %v584 = vpop.f32.mrb[0].mxu0
    %585 = vmatprep.mubr.f32.mxu0 0.0
    %586 = vmatmul.mubr.f32.gmra.mrb[0].mxu0 %v494
    %v587 = vpop.f32.mrb[0].mxu0
    %v588 = vadd.f32 0.0, %v587
    %v589 = vpop.f32.mrb[0].mxu0
    %590 = vmatprep.mubr.f32.mxu0 0.0
    %591 = vmatmul.mubr.f32.gmra.mrb[0].mxu0 %v497
    %v592 = vpop.f32.mrb[0].mxu0
    %v593 = vadd.f32 0.0, %v592
    %v594 = vpop.f32.mrb[0].mxu0
    %595 = vmatprep.mubr.f32.mxu0 0.0
    %596 = vmatmul.mubr.f32.gmra.mrb[0].mxu0 %v500
    %v597 = vpop.f32.mrb[0].mxu0
    %v598 = vadd.f32 0.0, %v597
    %v599 = vpop.f32.mrb[0].mxu0
    %600 = vmatprep.mubr.f32.mxu0 0.0
    %601 = vmatmul.mubr.f32.gmra.mrb[0].mxu0 %v503
    %v602 = vpop.f32.mrb[0].mxu0
    %v603 = vadd.f32 0.0, %v602
    %v604 = vpop.f32.mrb[0].mxu0
    %605 = vmatprep.mubr.f32.mxu0 0.0
    %606 = vmatmul.mubr.f32.gmra.mrb[0].mxu0 %v506
    %v607 = vpop.f32.mrb[0].mxu0
    %v608 = vadd.f32 0.0, %v607
    %v609 = vpop.f32.mrb[0].mxu0
    %610 = vmatprep.mubr.f32.mxu0 0.0
    %611 = vmatmul.mubr.f32.gmra.mrb[0].mxu0 %v509
    %v612 = vpop.f32.mrb[0].mxu0
    %v613 = vadd.f32 0.0, %v612
    %v614 = vpop.f32.mrb[0].mxu0
    %615 = vdwg.mxu0
    %618 = vrot.lane.b32.xlu0 %v588, 8
    %v619 = vpop.permute.xlu0 %618
    %620 = vrot.lane.b32.xlu0 %v593, 8
    %v621 = vpop.permute.xlu0 %620
    %626 = vrot.lane.b32.xlu0 %v598, 16
    %v627 = vpop.permute.xlu0 %626
    %628 = vrot.lane.b32.xlu0 %v603, 16
    %v629 = vpop.permute.xlu0 %628
    %634 = vrot.lane.b32.xlu0 %v608, 24
    %v635 = vpop.permute.xlu0 %634
    %636 = vrot.lane.b32.xlu0 %v613, 24
    %v637 = vpop.permute.xlu0 %636
    %v640 = vsel %vm220, %v578, %v619
    %v641 = vsel %vm220, %v583, %v621
    %vm642 = vcmask 130048
    %v643 = vsel %vm642, %v640, %v627
    %v644 = vsel %vm642, %v641, %v629
    %vm645 = vcmask 195584
    %v646 = vsel %vm645, %v643, %v635
    %v647 = vsel %vm645, %v644, %v637
    %v648 = vlaneseq
    %v649 = vshrl.u32 %v648, 7
    %v650 = vsub.s32 1, %v649
    %v651 = vrot.slane %v54, %v650
    %v653 = vsel %vm59, %v646, 0
    %v656 = vsel %vm59, %v647, 0
    %658 = vmatprep.subr.mxu0 0.0
    %659 = vmatpush1.msra.mxu0 %v35
    %660 = vmatprep.subr.mxu0 0.0
    %661 = vmatpush1.msra.mxu0 %v38
    %662 = vmatprep.subr.mxu0 0.0
    %663 = vmatpush1.msra.mxu0 %v41
    %664 = vmatprep.subr.mxu0 0.0
    %665 = vmatpush1.msra.mxu0 %v44
    %666 = vmatprep.subr.mxu0 0.0
    %667 = vmatpush1.msra.mxu0 0.0
    %668 = vmatprep.subr.mxu0 0.0
    %669 = vmatpush1.msra.mxu0 0.0
    %670 = vmatprep.subr.mxu0 0.0
    %671 = vmatpush1.msra.mxu0 0.0
    %672 = vmatprep.subr.mxu0 0.0
    %673 = vmatpush1.msra.mxu0 0.0
    %674 = vmatprep.subr.mxu0 0.0
    %675 = vmatpush1.msra.mxu0 0.0
    %676 = vmatprep.subr.mxu0 0.0
    %677 = vmatpush1.msra.mxu0 0.0
    %678 = vmatprep.subr.mxu0 0.0
    %679 = vmatpush1.msra.mxu0 0.0
    %680 = vmatprep.subr.mxu0 0.0
    %681 = vmatpush1.msra.mxu0 0.0
    %682 = vmatprep.subr.mxu0 0.0
    %683 = vmatpush1.msra.mxu0 0.0
    %684 = vmatprep.subr.mxu0 0.0
    %685 = vmatpush1.msra.mxu0 0.0
    %686 = vmatprep.subr.mxu0 0.0
    %687 = vmatpush1.msra.mxu0 0.0
    %688 = vmatprep.subr.mxu0 0.0
    %689 = vmatpush1.msra.mxu0 0.0
    %690 = vmatprep.subr.mxu0 0.0
    %691 = vmatpush1.msra.mxu0 0.0
    %692 = vmatprep.subr.mxu0 0.0
    %693 = vmatpush1.msra.mxu0 0.0
    %694 = vmatprep.subr.mxu0 0.0
    %695 = vmatpush1.msra.mxu0 0.0
    %696 = vmatprep.subr.mxu0 0.0
    %697 = vmatpush1.msra.mxu0 0.0
    %698 = vmatprep.subr.mxu0 0.0
    %699 = vmatpush1.msra.mxu0 0.0
    %700 = vmatprep.subr.mxu0 0.0
    %701 = vmatpush1.msra.mxu0 0.0
    %702 = vmatprep.subr.mxu0 0.0
    %703 = vmatpush1.msra.mxu0 0.0
    %704 = vmatprep.subr.mxu0 0.0
    %705 = vmatpush1.msra.mxu0 0.0
    %706 = vmatprep.subr.mxu0 0.0
    %707 = vmatpush1.msra.mxu0 0.0
    %708 = vmatprep.subr.mxu0 0.0
    %709 = vmatpush1.msra.mxu0 0.0
    %710 = vmatprep.subr.mxu0 0.0
    %711 = vmatpush1.msra.mxu0 0.0
    %712 = vmatprep.subr.mxu0 0.0
    %713 = vmatpush1.msra.mxu0 0.0
    %714 = vmatprep.subr.mxu0 0.0
    %715 = vmatpush1.msra.mxu0 0.0
    %716 = vmatprep.subr.mxu0 0.0
    %717 = vmatpush1.msra.mxu0 0.0
    %718 = vmatprep.subr.mxu0 0.0
    %719 = vmatpush1.msra.mxu0 0.0
    %720 = vmatprep.subr.mxu0 0.0
    %721 = vmatpush1.msra.mxu0 0.0
    %722 = vmatprep.mubr.f32.mxu0 0.0
    %723 = vmatmul.mubr.f32.gmra.mrb[0].mxu0 %v653
    %v724 = vpop.f32.mrb[0].mxu0
    %v725 = vadd.f32 %v651, %v724
    %v726 = vpop.f32.mrb[0].mxu0
    %727 = vmatprep.mubr.f32.mxu0 0.0
    %728 = vmatmul.mubr.f32.gmra.mrb[0].mxu0 %v656
    %v729 = vpop.f32.mrb[0].mxu0
    %v730 = vadd.f32 %v651, %v729
    %v731 = vpop.f32.mrb[0].mxu0
    %732 = vdwg.mxu0
    %v733 = vadd.f32 %v725, %v32
    %v734 = vadd.f32 %v730, %v33
    %v735 = vsel %vm59, %v733, 0.0
    %736 = vadd.xlane.f32.xlu0 %v735
    %v737 = vpop.xlane.xlu0 %736
    %v738 = vsel %vm59, %v734, 0.0
    %739 = vadd.xlane.f32.xlu0 %v738
    %v740 = vpop.xlane.xlu0 %739
    %v741 = vrcp.pop 32.0
    %v742 = vmul.f32 %v737, %v741
    %v743 = vmul.f32 %v740, %v741
    %v744 = vsub.f32 %v733, %v742
    %v745 = vsub.f32 %v734, %v743
    %v746 = vmul.f32 %v744, %v744
    %v747 = vmul.f32 %v745, %v745
    %v748 = vsel %vm59, %v746, 0.0
    %749 = vadd.xlane.f32.xlu0 %v748
    %v750 = vpop.xlane.xlu0 %749
    %v751 = vsel %vm59, %v747, 0.0
    %752 = vadd.xlane.f32.xlu0 %v751
    %v753 = vpop.xlane.xlu0 %752
    %v754 = vmul.f32 %v750, %v741
    %v755 = vmul.f32 %v753, %v741
    %v756 = vadd.f32 %v754, 1e-05
    %v757 = vadd.f32 %v755, 1e-05
    %v758 = vrsqrt.pop %v756
    %v759 = vrsqrt.pop %v757
    %v760 = vmul.f32 %v744, %v758
    %v761 = vmul.f32 %v745, %v759
    %v762 = vlaneseq
    %v763 = vshrl.u32 %v762, 7
    %v764 = vsub.s32 2, %v763
    %v765 = vrot.slane %v54, %v764
    %v766 = vmul.f32 %v760, %v765
    %v767 = vmul.f32 %v761, %v765
    %v768 = vlaneseq
    %v769 = vshrl.u32 %v768, 7
    %v770 = vsub.s32 3, %v769
    %v771 = vrot.slane %v54, %v770
    %v772 = vadd.f32 %v766, %v771
    %v773 = vadd.f32 %v767, %v771
    %v774 = vlaneseq
    %v775 = vshrl.u32 %v774, 7
    %v776 = vsub.s32 4, %v775
    %v777 = vrot.slane %v54, %v776
    %v779 = vsel %vm59, %v772, 0
    %v782 = vsel %vm59, %v773, 0
    %784 = vmatprep.subr.mxu0 0.0
    %785 = vmatpush1.msra.mxu0 %v36
    %786 = vmatprep.subr.mxu0 0.0
    %787 = vmatpush1.msra.mxu0 %v39
    %788 = vmatprep.subr.mxu0 0.0
    %789 = vmatpush1.msra.mxu0 %v42
    %790 = vmatprep.subr.mxu0 0.0
    %791 = vmatpush1.msra.mxu0 %v45
    %792 = vmatprep.subr.mxu0 0.0
    %793 = vmatpush1.msra.mxu0 0.0
    %794 = vmatprep.subr.mxu0 0.0
    %795 = vmatpush1.msra.mxu0 0.0
    %796 = vmatprep.subr.mxu0 0.0
    %797 = vmatpush1.msra.mxu0 0.0
    %798 = vmatprep.subr.mxu0 0.0
    %799 = vmatpush1.msra.mxu0 0.0
    %800 = vmatprep.subr.mxu0 0.0
    %801 = vmatpush1.msra.mxu0 0.0
    %802 = vmatprep.subr.mxu0 0.0
    %803 = vmatpush1.msra.mxu0 0.0
    %804 = vmatprep.subr.mxu0 0.0
    %805 = vmatpush1.msra.mxu0 0.0
    %806 = vmatprep.subr.mxu0 0.0
    %807 = vmatpush1.msra.mxu0 0.0
    %808 = vmatprep.subr.mxu0 0.0
    %809 = vmatpush1.msra.mxu0 0.0
    %810 = vmatprep.subr.mxu0 0.0
    %811 = vmatpush1.msra.mxu0 0.0
    %812 = vmatprep.subr.mxu0 0.0
    %813 = vmatpush1.msra.mxu0 0.0
    %814 = vmatprep.subr.mxu0 0.0
    %815 = vmatpush1.msra.mxu0 0.0
    %816 = vmatprep.subr.mxu0 0.0
    %817 = vmatpush1.msra.mxu0 0.0
    %818 = vmatprep.subr.mxu0 0.0
    %819 = vmatpush1.msra.mxu0 0.0
    %820 = vmatprep.subr.mxu0 0.0
    %821 = vmatpush1.msra.mxu0 0.0
    %822 = vmatprep.subr.mxu0 0.0
    %823 = vmatpush1.msra.mxu0 0.0
    %824 = vmatprep.subr.mxu0 0.0
    %825 = vmatpush1.msra.mxu0 0.0
    %826 = vmatprep.subr.mxu0 0.0
    %827 = vmatpush1.msra.mxu0 0.0
    %828 = vmatprep.subr.mxu0 0.0
    %829 = vmatpush1.msra.mxu0 0.0
    %830 = vmatprep.subr.mxu0 0.0
    %831 = vmatpush1.msra.mxu0 0.0
    %832 = vmatprep.subr.mxu0 0.0
    %833 = vmatpush1.msra.mxu0 0.0
    %834 = vmatprep.subr.mxu0 0.0
    %835 = vmatpush1.msra.mxu0 0.0
    %836 = vmatprep.subr.mxu0 0.0
    %837 = vmatpush1.msra.mxu0 0.0
    %838 = vmatprep.subr.mxu0 0.0
    %839 = vmatpush1.msra.mxu0 0.0
    %840 = vmatprep.subr.mxu0 0.0
    %841 = vmatpush1.msra.mxu0 0.0
    %842 = vmatprep.subr.mxu0 0.0
    %843 = vmatpush1.msra.mxu0 0.0
    %844 = vmatprep.subr.mxu0 0.0
    %845 = vmatpush1.msra.mxu0 0.0
    %846 = vmatprep.subr.mxu0 0.0
    %847 = vmatpush1.msra.mxu0 0.0
    %848 = vmatprep.mubr.f32.mxu0 0.0
    %849 = vmatmul.mubr.f32.gmra.mrb[0].mxu0 %v779
    %v850 = vpop.f32.mrb[0].mxu0
    %v851 = vadd.f32 %v777, %v850
    %v852 = vpop.f32.mrb[0].mxu0
    %853 = vmatprep.mubr.f32.mxu0 0.0
    %854 = vmatmul.mubr.f32.gmra.mrb[0].mxu0 %v782
    %v855 = vpop.f32.mrb[0].mxu0
    %v856 = vadd.f32 %v777, %v855
    %v857 = vpop.f32.mrb[0].mxu0
    %858 = vdwg.mxu0
    %v859 = vmax.f32 %v851, 0.0
    %v860 = vmax.f32 %v856, 0.0
    %v861 = vlaneseq
    %v862 = vshrl.u32 %v861, 7
    %v863 = vsub.s32 5, %v862
    %v864 = vrot.slane %v54, %v863
    %v866 = vsel %vm374, %v859, 0
    %v869 = vsel %vm374, %v860, 0
    %871 = vmatprep.subr.mxu0 0.0
    %872 = vmatpush1.msra.mxu0 %v46
    %873 = vmatprep.subr.mxu0 0.0
    %874 = vmatpush1.msra.mxu0 %v47
    %875 = vmatprep.subr.mxu0 0.0
    %876 = vmatpush1.msra.mxu0 %v48
    %877 = vmatprep.subr.mxu0 0.0
    %878 = vmatpush1.msra.mxu0 %v49
    %879 = vmatprep.subr.mxu0 0.0
    %880 = vmatpush1.msra.mxu0 %v50
    %881 = vmatprep.subr.mxu0 0.0
    %882 = vmatpush1.msra.mxu0 %v51
    %883 = vmatprep.subr.mxu0 0.0
    %884 = vmatpush1.msra.mxu0 %v52
    %885 = vmatprep.subr.mxu0 0.0
    %886 = vmatpush1.msra.mxu0 %v53
    %887 = vmatprep.subr.mxu0 0.0
    %888 = vmatpush1.msra.mxu0 0.0
    %889 = vmatprep.subr.mxu0 0.0
    %890 = vmatpush1.msra.mxu0 0.0
    %891 = vmatprep.subr.mxu0 0.0
    %892 = vmatpush1.msra.mxu0 0.0
    %893 = vmatprep.subr.mxu0 0.0
    %894 = vmatpush1.msra.mxu0 0.0
    %895 = vmatprep.subr.mxu0 0.0
    %896 = vmatpush1.msra.mxu0 0.0
    %897 = vmatprep.subr.mxu0 0.0
    %898 = vmatpush1.msra.mxu0 0.0
    %899 = vmatprep.subr.mxu0 0.0
    %900 = vmatpush1.msra.mxu0 0.0
    %901 = vmatprep.subr.mxu0 0.0
    %902 = vmatpush1.msra.mxu0 0.0
    %903 = vmatprep.subr.mxu0 0.0
    %904 = vmatpush1.msra.mxu0 0.0
    %905 = vmatprep.subr.mxu0 0.0
    %906 = vmatpush1.msra.mxu0 0.0
    %907 = vmatprep.subr.mxu0 0.0
    %908 = vmatpush1.msra.mxu0 0.0
    %909 = vmatprep.subr.mxu0 0.0
    %910 = vmatpush1.msra.mxu0 0.0
    %911 = vmatprep.subr.mxu0 0.0
    %912 = vmatpush1.msra.mxu0 0.0
    %913 = vmatprep.subr.mxu0 0.0
    %914 = vmatpush1.msra.mxu0 0.0
    %915 = vmatprep.subr.mxu0 0.0
    %916 = vmatpush1.msra.mxu0 0.0
    %917 = vmatprep.subr.mxu0 0.0
    %918 = vmatpush1.msra.mxu0 0.0
    %919 = vmatprep.subr.mxu0 0.0
    %920 = vmatpush1.msra.mxu0 0.0
    %921 = vmatprep.subr.mxu0 0.0
    %922 = vmatpush1.msra.mxu0 0.0
    %923 = vmatprep.subr.mxu0 0.0
    %924 = vmatpush1.msra.mxu0 0.0
    %925 = vmatprep.subr.mxu0 0.0
    %926 = vmatpush1.msra.mxu0 0.0
    %927 = vmatprep.subr.mxu0 0.0
    %928 = vmatpush1.msra.mxu0 0.0
    %929 = vmatprep.subr.mxu0 0.0
    %930 = vmatpush1.msra.mxu0 0.0
    %931 = vmatprep.subr.mxu0 0.0
    %932 = vmatpush1.msra.mxu0 0.0
    %933 = vmatprep.subr.mxu0 0.0
    %934 = vmatpush1.msra.mxu0 0.0
    %935 = vmatprep.mubr.f32.mxu0 0.0
    %936 = vmatmul.mubr.f32.gmra.mrb[0].mxu0 %v866
    %v937 = vpop.f32.mrb[0].mxu0
    %v938 = vadd.f32 %v864, %v937
    %v939 = vpop.f32.mrb[0].mxu0
    %940 = vmatprep.mubr.f32.mxu0 0.0
    %941 = vmatmul.mubr.f32.gmra.mrb[0].mxu0 %v869
    %v942 = vpop.f32.mrb[0].mxu0
    %v943 = vadd.f32 %v864, %v942
    %v944 = vpop.f32.mrb[0].mxu0
    %945 = vdwg.mxu0
    %v946 = vadd.f32 %v938, %v772
    %v947 = vadd.f32 %v943, %v773
    %v948 = vsel %vm59, %v946, 0.0
    %949 = vadd.xlane.f32.xlu0 %v948
    %v950 = vpop.xlane.xlu0 %949
    %v951 = vsel %vm59, %v947, 0.0
    %952 = vadd.xlane.f32.xlu0 %v951
    %v953 = vpop.xlane.xlu0 %952
    %v954 = vmul.f32 %v950, %v741
    %v955 = vmul.f32 %v953, %v741
    %v956 = vsub.f32 %v946, %v954
    %v957 = vsub.f32 %v947, %v955
    %v958 = vmul.f32 %v956, %v956
    %v959 = vmul.f32 %v957, %v957
    %v960 = vsel %vm59, %v958, 0.0
    %961 = vadd.xlane.f32.xlu0 %v960
    %v962 = vpop.xlane.xlu0 %961
    %v963 = vsel %vm59, %v959, 0.0
    %964 = vadd.xlane.f32.xlu0 %v963
    %v965 = vpop.xlane.xlu0 %964
    %v966 = vmul.f32 %v962, %v741
    %v967 = vmul.f32 %v965, %v741
    %v968 = vadd.f32 %v966, 1e-05
    %v969 = vadd.f32 %v967, 1e-05
    %v970 = vrsqrt.pop %v968
    %v971 = vrsqrt.pop %v969
    %v972 = vmul.f32 %v956, %v970
    %v973 = vmul.f32 %v957, %v971
    %v974 = vlaneseq
    %v975 = vshrl.u32 %v974, 7
    %v976 = vsub.s32 6, %v975
    %v977 = vrot.slane %v54, %v976
    %v978 = vmul.f32 %v972, %v977
    %v979 = vmul.f32 %v973, %v977
    %v980 = vlaneseq
    %v981 = vshrl.u32 %v980, 7
    %v982 = vsub.s32 7, %v981
    %v983 = vrot.slane %v54, %v982
    %v984 = vadd.f32 %v978, %v983
    %v985 = vadd.f32 %v979, %v983
    %986 = vst.msk [vmem:[#allocation5] sm:$0xff] %vm59, %v984
    %987 = vst.msk [vmem:[#allocation5 + $0x8] sm:$0xff] %vm59, %v985
    // Predicated region
    $region22: #{tpu_custom_call.1} parent=1 // pred_check
      _
    $region23: #{tpu_custom_call.1} parent=1 // pred_check_branch
      %989 = sbr.rel (0) target = $region25
    $region24: #{tpu_custom_call.1} parent=1 // pred_region
      %s991 = ssub.s32 256, 256
      %992 = vsyncadd [#allocation4], %s991
      %s993 = sshll.u32 [#allocation5], 4
      %s994 = int_to_ptr.vmem [resolvable:$true] %s993
      %999 = dma.vmem_to_hbm [thread:$0]  %s994, 256, %s4, [#allocation4], 128, 128, 8
    $region25: #{tpu_custom_call.1} parent=1 // pred_fallthru
      _
    // Predicated region
    $region26: #{tpu_custom_call.1} parent=1 // pred_check
      _
    $region27: #{tpu_custom_call.1} parent=1 // pred_check_branch
      %1001 = sbr.rel (0) target = $region29
    $region28: #{tpu_custom_call.1} parent=1 // pred_region
      %1002 = dma.done [#allocation4], 256
    $region29: #{tpu_custom_call.1} parent=1 // pred_fallthru
      _
    %1003 = vsyncpa [#allocation3], 1
    %1004 = vsyncpa [#allocation4], 1

</llo_original>
